<compile_context>
chip_gen: v6e
topology: v6e:2x2x1
jax: 0.10.0
libtpu: 0.0.40
codegen_flags: <defaults>
</compile_context>

<pallas_src>
import functools

import jax
import jax.numpy as jnp
from jax.experimental import pallas as pl
from jax.experimental.pallas import tpu as pltpu

INV_SQRT2 = 0.7071067811865476


# ------------------------------ tiling helper -------------------------------

def _pick_tile(dim, cap, align):
    """Largest tile <= cap that evenly divides `dim`.

    Falls back to the full dim when dim <= cap or no aligned divisor exists
    (full-extent blocks are always legal w.r.t. the (8, 128) rule)."""
    if dim <= cap:
        return dim
    t = (cap // align) * align
    while t >= align:
        if dim % t == 0:
            return t
        t -= align
    return dim


# ----------------------------- Pallas kernels ------------------------------

def _matmul_bias_kernel(x_ref, w_ref, b_ref, o_ref, acc_ref, *, gelu):
    """Tiled x @ W + b (optional fused erf-GELU). bf16 MXU operands, f32 acc."""
    @pl.when(pl.program_id(2) == 0)
    def _():
        acc_ref[...] = jnp.zeros_like(acc_ref)

    acc_ref[...] += jnp.dot(
        x_ref[...].astype(jnp.bfloat16), w_ref[...],
        preferred_element_type=jnp.float32)

    @pl.when(pl.program_id(2) == pl.num_programs(2) - 1)
    def _():
        y = acc_ref[...] + b_ref[...]
        if gelu:
            # exact (erf) GELU, matching HF BERT's "gelu" activation
            y = 0.5 * y * (1.0 + jax.lax.erf(y * INV_SQRT2))
        o_ref[...] = y.astype(o_ref.dtype)


def _layernorm_kernel(x_ref, g_ref, b_ref, o_ref):
    x = x_ref[...].astype(jnp.float32)
    mean = jnp.mean(x, axis=-1, keepdims=True)
    var = jnp.mean((x - mean) ** 2, axis=-1, keepdims=True)
    inv = jax.lax.rsqrt(var + 1e-12)          # BERT LayerNorm eps
    o_ref[...] = ((x - mean) * inv * g_ref[...] + b_ref[...]).astype(o_ref.dtype)


def _residual_layernorm_kernel(x_ref, r_ref, g_ref, b_ref, o_ref):
    # residual add fused into the LayerNorm tile (saves one full HBM round trip)
    x = x_ref[...].astype(jnp.float32) + r_ref[...].astype(jnp.float32)
    mean = jnp.mean(x, axis=-1, keepdims=True)
    var = jnp.mean((x - mean) ** 2, axis=-1, keepdims=True)
    inv = jax.lax.rsqrt(var + 1e-12)
    o_ref[...] = ((x - mean) * inv * g_ref[...] + b_ref[...]).astype(o_ref.dtype)


def _attention_kernel(q_ref, k_ref, v_ref, m_ref, o_ref):
    # one batch element per grid step, all heads in the block
    q = q_ref[0].astype(jnp.bfloat16)          # [nh, S, Dh]
    k = k_ref[0].astype(jnp.bfloat16)          # [nh, S, Dh]
    v = v_ref[0].astype(jnp.bfloat16)          # [nh, S, Dh]
    m = m_ref[0]                               # [1, S] additive mask (f32)
    scale = 1.0 / (q.shape[-1] ** 0.5)
    # contract on the last dims directly (no explicit K transpose / XLU work)
    s = jnp.einsum("hqd,hkd->hqk", q, k,
                   preferred_element_type=jnp.float32) * scale
    s = s + m[None, :, :]
    s = s - jnp.max(s, axis=-1, keepdims=True)
    p = jnp.exp(s)
    p = p * pl.reciprocal(jnp.sum(p, axis=-1, keepdims=True), approx=True)
    o_ref[0] = jnp.einsum("hqk,hkd->hqd", p.astype(jnp.bfloat16), v,
                          preferred_element_type=jnp.float32).astype(o_ref.dtype)


# ----------------------------- Pallas wrappers ------------------------------

def pallas_matmul_bias(x, w, b, gelu=False, tm_cap=256, tn_cap=256, tk_cap=512):
    M, K = x.shape
    K2, N = w.shape
    assert K == K2
    tm = _pick_tile(M, tm_cap, 8)
    tn = _pick_tile(N, tn_cap, 128)
    tk = _pick_tile(K, tk_cap, 128)
    grid = (M // tm, N // tn, K // tk)
    kernel = functools.partial(_matmul_bias_kernel, gelu=gelu)
    return pl.pallas_call(
        kernel,
        out_shape=jax.ShapeDtypeStruct((M, N), jnp.float32),
        grid=grid,
        in_specs=[
            pl.BlockSpec((tm, tk), lambda i, j, k: (i, k)),
            pl.BlockSpec((tk, tn), lambda i, j, k: (k, j)),
            pl.BlockSpec((1, tn), lambda i, j, k: (0, j)),
        ],
        out_specs=pl.BlockSpec((tm, tn), lambda i, j, k: (i, j)),
        scratch_shapes=[pltpu.VMEM((tm, tn), jnp.float32)],
        compiler_params=pltpu.CompilerParams(
            dimension_semantics=("parallel", "parallel", "arbitrary")),
    )(x, w, b.reshape(1, N))


def pallas_layernorm(x, gamma, beta, residual=None, tm_cap=512):
    M, H = x.shape
    tm = _pick_tile(M, tm_cap, 8)
    grid = (M // tm,)
    row_spec = pl.BlockSpec((tm, H), lambda i: (i, 0))
    vec_spec = pl.BlockSpec((1, H), lambda i: (0, 0))
    if residual is None:
        kernel = _layernorm_kernel
        in_specs = [row_spec, vec_spec, vec_spec]
        args = (x, gamma.reshape(1, H), beta.reshape(1, H))
    else:
        kernel = _residual_layernorm_kernel
        in_specs = [row_spec, row_spec, vec_spec, vec_spec]
        args = (x, residual, gamma.reshape(1, H), beta.reshape(1, H))
    return pl.pallas_call(
        kernel,
        out_shape=jax.ShapeDtypeStruct((M, H), jnp.float32),
        grid=grid,
        in_specs=in_specs,
        out_specs=row_spec,
        compiler_params=pltpu.CompilerParams(dimension_semantics=("parallel",)),
    )(*args)


def pallas_attention(q, k, v, add_mask):
    """q, k, v: [B, nh, S, Dh]; add_mask: [B, 1, S] additive mask."""
    B, nh, S, dh = q.shape
    qkv_spec = pl.BlockSpec((1, nh, S, dh), lambda b: (b, 0, 0, 0))
    return pl.pallas_call(
        _attention_kernel,
        out_shape=jax.ShapeDtypeStruct((B, nh, S, dh), jnp.float32),
        grid=(B,),
        in_specs=[qkv_spec, qkv_spec, qkv_spec,
                  pl.BlockSpec((1, 1, S), lambda b: (b, 0, 0))],
        out_specs=qkv_spec,
        compiler_params=pltpu.CompilerParams(dimension_semantics=("parallel",)),
    )(q, k, v, add_mask)


# ----------------------------- model definition -----------------------------

def init_params(key, cfg):
    H, I, V, P, L, NL = (cfg["hidden"], cfg["inter"], cfg["vocab"],
                         cfg["max_pos"], cfg["layers"], cfg["num_labels"])
    NPAD = max(128, NL)   # lane-dense classifier head

    def nrm_bf16(k, shape):
        return (0.02 * jax.random.normal(k, shape)).astype(jnp.bfloat16)

    def nrm_f32(k, shape):
        return (0.02 * jax.random.normal(k, shape)).astype(jnp.float32)

    keys = iter(jax.random.split(key, 16 + 8 * L))
    params = {
        "tok_emb": nrm_f32(next(keys), (V, H)),
        "pos_emb": nrm_f32(next(keys), (P, H)),
        "type_emb": nrm_f32(next(keys), (2, H)),
        "emb_ln_g": jnp.ones((H,), jnp.float32),
        "emb_ln_b": jnp.zeros((H,), jnp.float32),
        # classifier head padded to 128 output lanes; logits sliced to NL later
        "cls_w": jnp.zeros((H, NPAD), jnp.bfloat16).at[:, :NL].set(
            nrm_bf16(next(keys), (H, NL))),
        "cls_b": jnp.zeros((NPAD,), jnp.float32),
        "layers": [],
    }
    for _ in range(L):
        params["layers"].append({
            # fused Q|K|V projection -> one [H, 3H] matmul per layer
            "wqkv": nrm_bf16(next(keys), (H, 3 * H)),
            "bqkv": jnp.zeros((3 * H,), jnp.float32),
            "wo": nrm_bf16(next(keys), (H, H)),
            "bo": jnp.zeros((H,), jnp.float32),
            "ln1_g": jnp.ones((H,), jnp.float32),
            "ln1_b": jnp.zeros((H,), jnp.float32),
            "w1": nrm_bf16(next(keys), (H, I)),
            "b1": jnp.zeros((I,), jnp.float32),
            "w2": nrm_bf16(next(keys), (I, H)),
            "b2": jnp.zeros((H,), jnp.float32),
            "ln2_g": jnp.ones((H,), jnp.float32),
            "ln2_b": jnp.zeros((H,), jnp.float32),
        })
    return params


def forward(params, ids, mask, cfg):
    """Pallas forward: logits = Linear(Dropout(BERT(ids, mask)[:, 0]))."""
    B, S = ids.shape
    H, nh = cfg["hidden"], cfg["heads"]
    dh = H // nh
    NL = cfg["num_labels"]

    # embeddings (gathers stay in plain JAX) + LayerNorm kernel
    x = (params["tok_emb"][ids]
         + params["pos_emb"][:S][None]
         + params["type_emb"][0][None, None])
    xf = pallas_layernorm(x.reshape(B * S, H),
                          params["emb_ln_g"], params["emb_ln_b"])

    # additive attention mask, kept un-replicated as [B, 1, S]
    add_mask = ((1.0 - mask.astype(jnp.float32)) * -1e4).reshape(B, 1, S)

    for lyr in params["layers"]:
        # ---- self-attention block (fused QKV: one launch, one read of xf) ----
        qkv = pallas_matmul_bias(xf, lyr["wqkv"], lyr["bqkv"])
        qkv = qkv.reshape(B, S, 3, nh, dh).transpose(2, 0, 3, 1, 4)
        # TODO(synk): head split/merge still goes through XLA transposes; folding
        # it into the attention kernel's BlockSpecs would remove two more HBM
        # round trips of the activation per layer.
        ctx = pallas_attention(qkv[0], qkv[1], qkv[2], add_mask)
        ctx = ctx.transpose(0, 2, 1, 3).reshape(B * S, H)
        attn_out = pallas_matmul_bias(ctx, lyr["wo"], lyr["bo"])
        xf = pallas_layernorm(attn_out, lyr["ln1_g"], lyr["ln1_b"], residual=xf)

        # ---- feed-forward block (GELU fused into first matmul kernel) ----
        ff = pallas_matmul_bias(xf, lyr["w1"], lyr["b1"], gelu=True)
        ff = pallas_matmul_bias(ff, lyr["w2"], lyr["b2"])
        xf = pallas_layernorm(ff, lyr["ln2_g"], lyr["ln2_b"], residual=xf)

    # cls_hidden_state = last_hidden_state[:, 0, :]
    cls = xf.reshape(B, S, H)[:, 0, :]
    # nn.Dropout(0.1) is the identity in eval/inference mode.
    # TODO(synk): training-mode dropout (random mask * 1/0.9) not implemented.
    logits_pad = pallas_matmul_bias(cls, params["cls_w"], params["cls_b"])
    return logits_pad[:, :NL]


# --------------------------- pure-JAX reference -----------------------------

def forward_ref(params, ids, mask, cfg):
    B, S = ids.shape
    H, nh = cfg["hidden"], cfg["heads"]
    dh = H // nh
    NL = cfg["num_labels"]

    def mm(x, w, b):
        return jnp.dot(x.astype(jnp.bfloat16), w,
                       preferred_element_type=jnp.float32) + b

    def ln(x, g, b):
        m = jnp.mean(x, -1, keepdims=True)
        v = jnp.mean((x - m) ** 2, -1, keepdims=True)
        return (x - m) * jax.lax.rsqrt(v + 1e-12) * g + b

    x = (params["tok_emb"][ids]
         + params["pos_emb"][:S][None]
         + params["type_emb"][0][None, None])
    xf = ln(x, params["emb_ln_g"], params["emb_ln_b"]).reshape(B * S, H)
    am = (1.0 - mask.astype(jnp.float32)) * -1e4
    scale = 1.0 / (dh ** 0.5)

    for lyr in params["layers"]:
        qkv = mm(xf, lyr["wqkv"], lyr["bqkv"])
        qkv = qkv.reshape(B, S, 3, nh, dh).transpose(2, 0, 3, 1, 4)
        q = qkv[0].astype(jnp.bfloat16)
        k = qkv[1].astype(jnp.bfloat16)
        v = qkv[2].astype(jnp.bfloat16)
        s = jnp.einsum("bhqd,bhkd->bhqk", q, k,
                       preferred_element_type=jnp.float32) * scale
        s = s + am[:, None, None, :]
        p = jax.nn.softmax(s, axis=-1)
        ctx = jnp.einsum("bhqk,bhkd->bhqd", p.astype(jnp.bfloat16), v,
                         preferred_element_type=jnp.float32)
        ctx = ctx.transpose(0, 2, 1, 3).reshape(B * S, H)
        xf = ln(mm(ctx, lyr["wo"], lyr["bo"]) + xf, lyr["ln1_g"], lyr["ln1_b"])
        ff = mm(xf, lyr["w1"], lyr["b1"])
        ff = 0.5 * ff * (1.0 + jax.lax.erf(ff * INV_SQRT2))
        ff = mm(ff, lyr["w2"], lyr["b2"])
        xf = ln(ff + xf, lyr["ln2_g"], lyr["ln2_b"])

    cls = xf.reshape(B, S, H)[:, 0, :]
    return mm(cls, params["cls_w"], params["cls_b"])[:, :NL]


# ---------------------------------- main -------------------------------------

if __name__ == "__main__":
    cfg = dict(vocab=128, hidden=32, heads=4, layers=2, inter=64,
               max_pos=16, num_labels=2)

    key = jax.random.PRNGKey(0)
    k_params, k_ids = jax.random.split(key)
    params = init_params(k_params, cfg)

    B, S = 2, 8
    ids = jax.random.randint(k_ids, (B, S), 0, cfg["vocab"], dtype=jnp.int32)
    mask = jnp.ones((B, S), dtype=jnp.int32).at[1, 6:].set(0)   # pad 2 tokens

    logits = jax.block_until_ready(forward(params, ids, mask, cfg))
    ref = forward_ref(params, ids, mask, cfg)

    assert logits.shape == (B, cfg["num_labels"])
    assert jnp.allclose(logits, ref, atol=1e-2, rtol=1e-2), (logits, ref)

    print("KERNEL_OK")
</pallas_src>

<mosaic_0001>
module attributes {stable_mosaic.version = 11 : i64} {
  func.func @_layernorm_kernel(%arg0: i32, %arg1: memref<16x32xf32, #tpu.memory_space<vmem>>, %arg2: memref<1x32xf32, #tpu.memory_space<vmem>>, %arg3: memref<1x32xf32, #tpu.memory_space<vmem>>, %arg4: memref<16x32xf32, #tpu.memory_space<vmem>>) attributes {dimension_semantics = [#tpu.dimension_semantics<parallel>], iteration_bounds = array<i64: 1>, scalar_prefetch = 0 : i64, scratch_operands = 0 : i64, tpu.core_type = #tpu.core_type<tc>, window_params = [{transform_indices = @transform_0, window_bounds = array<i64: 16, 32>}, {pipeline_mode = #tpu.pipeline_mode<synchronous>, transform_indices = @transform_1, window_bounds = array<i64: 1, 32>}, {pipeline_mode = #tpu.pipeline_mode<synchronous>, transform_indices = @transform_2, window_bounds = array<i64: 1, 32>}, {transform_indices = @transform_3, window_bounds = array<i64: 16, 32>}]} {
    %c0 = arith.constant 0 : index
    %c0_0 = arith.constant 0 : index
    %0 = vector.load %arg1[%c0, %c0_0] : memref<16x32xf32, #tpu.memory_space<vmem>>, vector<16x32xf32>
    %cst = arith.constant dense<0.000000e+00> : vector<16xf32>
    %1 = vector.multi_reduction <add>, %0, %cst [1] : vector<16x32xf32> to vector<16xf32>
    %2 = vector.shape_cast %1 : vector<16xf32> to vector<16x1xf32>
    %cst_1 = arith.constant 3.200000e+01 : f32
    %3 = vector.broadcast %cst_1 : f32 to vector<16x1xf32>
    %4 = arith.divf %2, %3 : vector<16x1xf32>
    %5 = vector.broadcast %4 : vector<16x1xf32> to vector<16x32xf32>
    %6 = arith.subf %0, %5 : vector<16x32xf32>
    %7 = arith.mulf %6, %6 : vector<16x32xf32>
    %cst_2 = arith.constant dense<0.000000e+00> : vector<16xf32>
    %8 = vector.multi_reduction <add>, %7, %cst_2 [1] : vector<16x32xf32> to vector<16xf32>
    %9 = vector.shape_cast %8 : vector<16xf32> to vector<16x1xf32>
    %cst_3 = arith.constant 3.200000e+01 : f32
    %10 = vector.broadcast %cst_3 : f32 to vector<16x1xf32>
    %11 = arith.divf %9, %10 : vector<16x1xf32>
    %cst_4 = arith.constant 9.99999996E-13 : f32
    %12 = vector.broadcast %cst_4 : f32 to vector<16x1xf32>
    %13 = arith.addf %11, %12 : vector<16x1xf32>
    %14 = math.rsqrt %13 : vector<16x1xf32>
    %15 = vector.broadcast %4 : vector<16x1xf32> to vector<16x32xf32>
    %16 = arith.subf %0, %15 : vector<16x32xf32>
    %17 = vector.broadcast %14 : vector<16x1xf32> to vector<16x32xf32>
    %18 = arith.mulf %16, %17 : vector<16x32xf32>
    %c0_5 = arith.constant 0 : index
    %c0_6 = arith.constant 0 : index
    %19 = vector.load %arg2[%c0_5, %c0_6] : memref<1x32xf32, #tpu.memory_space<vmem>>, vector<1x32xf32>
    %20 = vector.broadcast %19 : vector<1x32xf32> to vector<16x32xf32>
    %21 = arith.mulf %18, %20 : vector<16x32xf32>
    %c0_7 = arith.constant 0 : index
    %c0_8 = arith.constant 0 : index
    %22 = vector.load %arg3[%c0_7, %c0_8] : memref<1x32xf32, #tpu.memory_space<vmem>>, vector<1x32xf32>
    %23 = vector.broadcast %22 : vector<1x32xf32> to vector<16x32xf32>
    %24 = arith.addf %21, %23 : vector<16x32xf32>
    %c0_9 = arith.constant 0 : index
    %c0_10 = arith.constant 0 : index
    %25 = vector.load %arg4[%c0_9, %c0_10] : memref<16x32xf32, #tpu.memory_space<vmem>>, vector<16x32xf32>
    tpu.vector_store %arg4[%c0_9, %c0_10], %24 {strides = array<i32>} : memref<16x32xf32, #tpu.memory_space<vmem>>, vector<16x32xf32>,
    return
  }
  func.func @transform_0(%arg0: i32) -> (i32, i32) {
    %c0_i32 = arith.constant 0 : i32
    %c0_i32_0 = arith.constant 0 : i32
    return %arg0, %c0_i32 : i32, i32
  }
  func.func @transform_1(%arg0: i32) -> (i32, i32) {
    %c0_i32 = arith.constant 0 : i32
    %c0_i32_0 = arith.constant 0 : i32
    %c0_i32_1 = arith.constant 0 : i32
    return %c0_i32, %c0_i32_0 : i32, i32
  }
  func.func @transform_2(%arg0: i32) -> (i32, i32) {
    %c0_i32 = arith.constant 0 : i32
    %c0_i32_0 = arith.constant 0 : i32
    %c0_i32_1 = arith.constant 0 : i32
    return %c0_i32, %c0_i32_0 : i32, i32
  }
  func.func @transform_3(%arg0: i32) -> (i32, i32) {
    %c0_i32 = arith.constant 0 : i32
    %c0_i32_0 = arith.constant 0 : i32
    return %arg0, %c0_i32 : i32, i32
  }
}

</mosaic_0001>

<llo_original>
// kernel: tpu_custom_call.1
$region0: #{tpu_custom_call.1}
  #allocation0 [shape = 'u32[]', space=smem, size = 0x4, offset = 0x4, fixed_abs, tag = 'smem constant byte address 0x4 - core index']
  #allocation1 [shape = 'u32[144,128]{1,0:T(1,128)}', space=vmem, size = 0x12000, scoped, tag = 'internal scratch']
  %s0 = inlined_call_operand.hbm [shape: f32[16,32], index: 0, kind: input, shape index: {}]
  %s1 = inlined_call_operand.vmem [shape: f32[1,32], index: 1, kind: input, shape index: {}]
  %s2 = inlined_call_operand.vmem [shape: f32[1,32], index: 2, kind: input, shape index: {}]
  %s3 = inlined_call_operand.hbm [shape: f32[16,32], index: 3, kind: output, shape index: {}]
  %s4 = sld [smem:[#allocation0]]
  $region26: #{tpu_custom_call.1} parent=0
    _
  %s6 = ssub.s32 1, %s4
  %s7 = scalar_select 0, %s6, %s4
  $region1: #{tpu_custom_call.1} parent=0
    #allocation2 [shape = 'u8[8192]{0}', space=vmem, size = 0x2000, scoped, tag = 'input window, operand 0, single buffered']
    #allocation3 [shape = 's32[1]{0}', space=sflag, size = 0x4, scoped, tag = 'scoped memory for tpu_custom_call.1']
    #allocation4 [shape = 's32[1]{0}', space=sflag, size = 0x4, scoped, tag = 'scoped memory for tpu_custom_call.1']
    #allocation5 [shape = 'u8[8192]{0}', space=vmem, size = 0x2000, scoped, tag = 'output window, operand 0, single buffered']
    %8 = vsyncpa [#allocation3], 0
    %9 = vsyncpa [#allocation4], 0
    // Predicated region
    $region2: #{tpu_custom_call.1} parent=1 // pred_check
      _
    $region3: #{tpu_custom_call.1} parent=1 // pred_check_branch
      %11 = sbr.rel (0) target = $region5
    $region4: #{tpu_custom_call.1} parent=1 // pred_region
      %s13 = ssub.s32 256, 256
      %14 = vsyncadd [#allocation3], %s13
      %s15 = sshll.u32 [#allocation2], 4
      %s16 = int_to_ptr.vmem [resolvable:$true] %s15
      %21 = dma.hbm_to_vmem [thread:$0]  %s0, 256, %s16, [#allocation3], 128, 128, 8
    $region5: #{tpu_custom_call.1} parent=1 // pred_fallthru
      _
    // Predicated region
    $region6: #{tpu_custom_call.1} parent=1 // pred_check
      _
    $region7: #{tpu_custom_call.1} parent=1 // pred_check_branch
      %23 = sbr.rel (0) target = $region9
    $region8: #{tpu_custom_call.1} parent=1 // pred_region
      _
    $region9: #{tpu_custom_call.1} parent=1 // pred_fallthru
      _
    // Predicated region
    $region10: #{tpu_custom_call.1} parent=1 // pred_check
      _
    $region11: #{tpu_custom_call.1} parent=1 // pred_check_branch
      %25 = sbr.rel (0) target = $region13
    $region12: #{tpu_custom_call.1} parent=1 // pred_region
      _
    $region13: #{tpu_custom_call.1} parent=1 // pred_fallthru
      _
    // Predicated region
    $region14: #{tpu_custom_call.1} parent=1 // pred_check
      _
    $region15: #{tpu_custom_call.1} parent=1 // pred_check_branch
      %27 = sbr.rel (0) target = $region17
    $region16: #{tpu_custom_call.1} parent=1 // pred_region
      %28 = dma.done [#allocation3], 256
    $region17: #{tpu_custom_call.1} parent=1 // pred_fallthru
      _
    %v29 = vld [vmem:[#allocation2] sm:$0xff]
    %v30 = vld [vmem:[#allocation2 + $0x8] sm:$0xff]
    %vm31 = vcmask 261120
    %v32 = vsel %vm31, %v29, 0.0
    %33 = vadd.xlane.f32.xlu0 %v32
    %v34 = vpop.xlane.xlu0 %33
    %v35 = vsel %vm31, %v30, 0.0
    %36 = vadd.xlane.f32.xlu0 %v35
    %v37 = vpop.xlane.xlu0 %36
    %v38 = vrcp.pop 32.0
    %v39 = vmul.f32 %v34, %v38
    %v40 = vmul.f32 %v37, %v38
    %v41 = vsub.f32 %v29, %v39
    %v42 = vsub.f32 %v30, %v40
    %v43 = vmul.f32 %v41, %v41
    %v44 = vmul.f32 %v42, %v42
    %v45 = vsel %vm31, %v43, 0.0
    %46 = vadd.xlane.f32.xlu0 %v45
    %v47 = vpop.xlane.xlu0 %46
    %v48 = vsel %vm31, %v44, 0.0
    %49 = vadd.xlane.f32.xlu0 %v48
    %v50 = vpop.xlane.xlu0 %49
    %v51 = vmul.f32 %v47, %v38
    %v52 = vmul.f32 %v50, %v38
    %v53 = vadd.f32 %v51, 1e-12
    %v54 = vadd.f32 %v52, 1e-12
    %v55 = vrsqrt.pop %v53
    %v56 = vrsqrt.pop %v54
    %v57 = vmul.f32 %v41, %v55
    %v58 = vmul.f32 %v42, %v56
    %v59 = vld [vmem:[%s1] sm:$0x1]
    %v61 = vlaneseq
    %v62 = vshrl.u32 %v61, 7
    %v63 = vsub.s32 0, %v62
    %v64 = vrot.slane %v59, %v63
    %v66 = vmul.f32 %v57, %v64
    %v67 = vmul.f32 %v58, %v64
    %v68 = vld [vmem:[%s2] sm:$0x1]
    %v70 = vlaneseq
    %v71 = vshrl.u32 %v70, 7
    %v72 = vsub.s32 0, %v71
    %v73 = vrot.slane %v68, %v72
    %v75 = vadd.f32 %v66, %v73
    %v76 = vadd.f32 %v67, %v73
    %77 = vst.msk [vmem:[#allocation5] sm:$0xff] %vm31, %v75
    %78 = vst.msk [vmem:[#allocation5 + $0x8] sm:$0xff] %vm31, %v76
    // Predicated region
    $region18: #{tpu_custom_call.1} parent=1 // pred_check
      _
    $region19: #{tpu_custom_call.1} parent=1 // pred_check_branch
      %80 = sbr.rel (0) target = $region21
    $region20: #{tpu_custom_call.1} parent=1 // pred_region
      %s82 = ssub.s32 256, 256
      %83 = vsyncadd [#allocation4], %s82
      %s84 = sshll.u32 [#allocation5], 4
      %s85 = int_to_ptr.vmem [resolvable:$true] %s84
      %90 = dma.vmem_to_hbm [thread:$0]  %s85, 256, %s3, [#allocation4], 128, 128, 8
    $region21: #{tpu_custom_call.1} parent=1 // pred_fallthru
      _
    // Predicated region
    $region22: #{tpu_custom_call.1} parent=1 // pred_check
      _
    $region23: #{tpu_custom_call.1} parent=1 // pred_check_branch
      %92 = sbr.rel (0) target = $region25
    $region24: #{tpu_custom_call.1} parent=1 // pred_region
      %93 = dma.done [#allocation4], 256
    $region25: #{tpu_custom_call.1} parent=1 // pred_fallthru
      _
    %94 = vsyncpa [#allocation3], 1
    %95 = vsyncpa [#allocation4], 1

</llo_original>
